<compile_context>
chip_gen: v7x
topology: tpu7x:2x2x1
jax: 0.10.0
libtpu: 0.0.40
codegen_flags: <defaults>
</compile_context>

<pallas_src>
import functools

import jax
import jax.numpy as jnp
from jax import lax
from jax.experimental import pallas as pl
from jax.experimental.pallas import tpu as pltpu


# ------------------------------- helpers -------------------------------------

def _round_up(x, m):
    return ((x + m - 1) // m) * m


def _apply_act(x, name):
    if name == "relu":
        return jnp.maximum(x, 0.0)
    if name == "tanh":
        return jnp.tanh(x)
    if name == "sigmoid":
        return jax.nn.sigmoid(x)
    return x  # identity


# ----------------------------- Pallas kernel ----------------------------------

def _fused_cnn_kernel(x_ref, *refs, layer_specs, activations):
    """Full conv stack for one batch element, entirely in VMEM.

    x_ref : (1, C0_pad, L0)           bf16, input with channel dim zero-padded to 8
    refs  : per-layer weight refs of shape (K, C_out_pad, C_in_pad) bf16, then o_ref
    o_ref : (1, C_last_pad, L_last)   f32
    """
    w_refs = refs[:-1]
    o_ref = refs[-1]

    h = x_ref[0]                      # (C_in_pad, L_in), bf16, channels on sublanes
    out = None
    for spec, act, w_ref in zip(layer_specs, activations, w_refs):
        ksize, stride, l_full, l_out = spec

        # Stride-1 "full" conv as a sum of K small matmuls; contraction is the
        # padded channel dim (sublanes of h), f32 accumulation on the MXU.
        acc = jnp.dot(w_ref[0], h[:, 0:l_full],
                      preferred_element_type=jnp.float32)
        for k in range(1, ksize):
            acc = acc + jnp.dot(w_ref[k], h[:, k:k + l_full],
                                preferred_element_type=jnp.float32)

        if stride > 1:
            # Downsample by `stride` via an exact 0/1 selection matmul
            # (keeps all memory accesses contiguous; no strided lane slicing).
            rows = lax.broadcasted_iota(jnp.int32, (l_full, l_out), 0)
            cols = lax.broadcasted_iota(jnp.int32, (l_full, l_out), 1)
            sel = (rows == stride * cols).astype(jnp.float32)
            acc = jnp.dot(acc, sel, preferred_element_type=jnp.float32)

        out = _apply_act(acc, act)            # (C_out_pad, L_out) f32
        h = out.astype(jnp.bfloat16)          # feed next layer in bf16

    o_ref[0] = out.astype(o_ref.dtype)


# ------------------------------ forward wrapper --------------------------------

def base_cnn_forward_pallas(x, weights, layers_config, activations,
                            compute_dtype=jnp.bfloat16):
    """x: (B, L) f32; weights[i]: (C_out, C_in, K) f32 (PyTorch Conv1d layout).

    Returns (B, C_out_last, L_out_last) f32, matching BaseCNN.forward
    (x.unsqueeze(1) -> stacked Conv1d(pad=0, bias=False) + activation).
    """
    B, L = x.shape

    # ---- static per-layer shapes
    layer_specs, c_in_pads, c_out_pads = [], [], []
    c_in, l_in = 1, L
    for (in_c, out_c, ksize, stride) in layers_config:
        assert in_c == c_in, "layer chain mismatch"
        l_full = l_in - ksize + 1
        l_out = (l_in - ksize) // stride + 1
        c_in_pads.append(_round_up(max(in_c, 8), 8))
        c_out_pads.append(_round_up(max(out_c, 8), 8))
        layer_specs.append((ksize, stride, l_full, l_out))
        c_in, l_in = out_c, l_out
    c_out_last = layers_config[-1][1]
    c_out_last_pad = c_out_pads[-1]
    l_out_last = layer_specs[-1][3]

    # ---- bf16 input, channels on sublanes (zero-padded 1 -> 8), positions on lanes
    c0_pad = c_in_pads[0]
    x_prep = jnp.zeros((B, c0_pad, L), compute_dtype)
    x_prep = x_prep.at[:, :1, :].set(x.astype(compute_dtype)[:, None, :])

    # ---- weights as (K, C_out_pad, C_in_pad), zero padded, bf16
    w_prepped = []
    for w, ci_p, co_p in zip(weights, c_in_pads, c_out_pads):
        co, ci, k = w.shape
        wp = jnp.zeros((k, co_p, ci_p), compute_dtype)
        wp = wp.at[:, :co, :ci].set(jnp.transpose(w, (2, 0, 1)).astype(compute_dtype))
        w_prepped.append(wp)

    kernel_fn = functools.partial(
        _fused_cnn_kernel,
        layer_specs=tuple(layer_specs),
        activations=tuple(activations),
    )

    in_specs = [pl.BlockSpec((1, c0_pad, L), lambda b: (b, 0, 0))]
    for wp in w_prepped:
        in_specs.append(pl.BlockSpec(wp.shape, lambda b: (0, 0, 0)))

    out_pad = pl.pallas_call(
        kernel_fn,
        out_shape=jax.ShapeDtypeStruct((B, c_out_last_pad, l_out_last), jnp.float32),
        grid=(B,),
        in_specs=in_specs,
        out_specs=pl.BlockSpec((1, c_out_last_pad, l_out_last), lambda b: (b, 0, 0)),
        compiler_params=pltpu.CompilerParams(dimension_semantics=("parallel",)),
    )(x_prep, *w_prepped)

    # Padded output channels (if any) correspond to zero weight rows; drop them.
    return out_pad[:, :c_out_last, :]


# --------------------------------- BaseCNN ------------------------------------

class BaseCNNPallas:
    """JAX/Pallas version of BaseCNN: stacked Conv1d (no bias, pad=0) + activations."""

    def __init__(self, layers_config, activations, key, init_scale=1.0):
        assert len(layers_config) == len(activations)
        self.layers_config = layers_config
        self.activations = activations
        self.weights = []
        # Deterministic synthetic init (kaiming-normal-like, scaled by init_scale).
        # TODO(synk): utils.read_config / exact torch.nn.init replication omitted
        #             (no config file); shapes and forward semantics are preserved.
        for (in_c, out_c, kernel, stride) in layers_config:
            key, sub = jax.random.split(key)
            fan_in = in_c * kernel
            std = (2.0 / fan_in) ** 0.5
            w = jax.random.normal(sub, (out_c, in_c, kernel), jnp.float32) * std * init_scale
            self.weights.append(w)

    def __call__(self, x):
        return base_cnn_forward_pallas(x, self.weights, self.layers_config,
                                       self.activations)


# -------------------------------- reference ------------------------------------

def _reference_forward(x, model, compute_dtype=jnp.bfloat16):
    """Pure-JAX reference (lax.conv_general_dilated), mirroring the kernel's
    bf16-operand / f32-accumulation precision so the comparison is tight."""
    y = x[:, None, :]
    for (in_c, out_c, kernel, stride), act, w in zip(
            model.layers_config, model.activations, model.weights):
        y = lax.conv_general_dilated(
            y.astype(compute_dtype), w.astype(compute_dtype),
            window_strides=(stride,), padding="VALID",
            dimension_numbers=("NCH", "OIH", "NCH"),
            preferred_element_type=jnp.float32)
        y = _apply_act(y, act)
    return y


if __name__ == "__main__":
    key = jax.random.PRNGKey(0)
    kx, kw = jax.random.split(key)

    # Small synthetic configuration: (in_c, out_c, kernel, stride)
    layers_config = [(1, 8, 3, 1), (8, 16, 3, 2), (16, 32, 3, 2)]
    activations = ["relu", "tanh", "sigmoid"]

    B, L = 2, 64
    x = jax.random.normal(kx, (B, L), jnp.float32)

    model = BaseCNNPallas(layers_config, activations, kw, init_scale=1.0)

    out = jax.block_until_ready(model(x))
    ref = jax.block_until_ready(_reference_forward(x, model))

    assert out.shape == ref.shape, (out.shape, ref.shape)
    max_err = float(jnp.max(jnp.abs(out - ref)))
    # bf16 operands / f32 accumulation in both paths; only summation order differs.
    assert jnp.allclose(out, ref, atol=1e-2, rtol=1e-2), max_err

    print("KERNEL_OK")
</pallas_src>

<mosaic_0001>
module attributes {stable_mosaic.version = 11 : i64} {
  func.func @_fused_cnn_kernel(%arg0: i32, %arg1: memref<1x8x64xbf16, #tpu.memory_space<vmem>>, %arg2: memref<3x8x8xbf16, #tpu.memory_space<vmem>>, %arg3: memref<3x16x8xbf16, #tpu.memory_space<vmem>>, %arg4: memref<3x32x16xbf16, #tpu.memory_space<vmem>>, %arg5: memref<1x32x14xf32, #tpu.memory_space<vmem>>) attributes {dimension_semantics = [#tpu.dimension_semantics<parallel>], iteration_bounds = array<i64: 2>, scalar_prefetch = 0 : i64, scratch_operands = 0 : i64, tpu.core_type = #tpu.core_type<tc>, window_params = [{transform_indices = @transform_0, window_bounds = array<i64: 1, 8, 64>}, {pipeline_mode = #tpu.pipeline_mode<synchronous>, transform_indices = @transform_1, window_bounds = array<i64: 3, 8, 8>}, {pipeline_mode = #tpu.pipeline_mode<synchronous>, transform_indices = @transform_2, window_bounds = array<i64: 3, 16, 8>}, {pipeline_mode = #tpu.pipeline_mode<synchronous>, transform_indices = @transform_3, window_bounds = array<i64: 3, 32, 16>}, {transform_indices = @transform_4, window_bounds = array<i64: 1, 32, 14>}]} {
    %c0 = arith.constant 0 : index
    %c0_0 = arith.constant 0 : index
    %c0_1 = arith.constant 0 : index
    %0 = vector.load %arg1[%c0, %c0_0, %c0_1] : memref<1x8x64xbf16, #tpu.memory_space<vmem>>, vector<1x8x64xbf16>
    %1 = vector.shape_cast %0 : vector<1x8x64xbf16> to vector<8x64xbf16>
    %c0_2 = arith.constant 0 : index
    %c0_3 = arith.constant 0 : index
    %c0_4 = arith.constant 0 : index
    %2 = vector.load %arg2[%c0_2, %c0_3, %c0_4] : memref<3x8x8xbf16, #tpu.memory_space<vmem>>, vector<1x8x8xbf16>
    %3 = vector.shape_cast %2 : vector<1x8x8xbf16> to vector<8x8xbf16>
    %4 = vector.extract_strided_slice %1 {offsets = [0, 0], sizes = [8, 62], strides = [1, 1]} : vector<8x64xbf16> to vector<8x62xbf16>
    %cst = arith.constant dense<0.000000e+00> : vector<8x62xf32>
    %5 = tpu.matmul %3, %4, %cst {dimension_numbers = #tpu.dot_dimension_numbers<[1], [0], [0], [1], [0, 0, 1, 1], [], []>} : vector<8x8xbf16>, vector<8x62xbf16>, vector<8x62xf32> -> vector<8x62xf32>
    %c1 = arith.constant 1 : index
    %c0_5 = arith.constant 0 : index
    %c0_6 = arith.constant 0 : index
    %6 = vector.load %arg2[%c1, %c0_5, %c0_6] : memref<3x8x8xbf16, #tpu.memory_space<vmem>>, vector<1x8x8xbf16>
    %7 = vector.shape_cast %6 : vector<1x8x8xbf16> to vector<8x8xbf16>
    %8 = vector.extract_strided_slice %1 {offsets = [0, 1], sizes = [8, 62], strides = [1, 1]} : vector<8x64xbf16> to vector<8x62xbf16>
    %cst_7 = arith.constant dense<0.000000e+00> : vector<8x62xf32>
    %9 = tpu.matmul %7, %8, %cst_7 {dimension_numbers = #tpu.dot_dimension_numbers<[1], [0], [0], [1], [0, 0, 1, 1], [], []>} : vector<8x8xbf16>, vector<8x62xbf16>, vector<8x62xf32> -> vector<8x62xf32>
    %10 = arith.addf %5, %9 : vector<8x62xf32>
    %c2 = arith.constant 2 : index
    %c0_8 = arith.constant 0 : index
    %c0_9 = arith.constant 0 : index
    %11 = vector.load %arg2[%c2, %c0_8, %c0_9] : memref<3x8x8xbf16, #tpu.memory_space<vmem>>, vector<1x8x8xbf16>
    %12 = vector.shape_cast %11 : vector<1x8x8xbf16> to vector<8x8xbf16>
    %13 = vector.extract_strided_slice %1 {offsets = [0, 2], sizes = [8, 62], strides = [1, 1]} : vector<8x64xbf16> to vector<8x62xbf16>
    %cst_10 = arith.constant dense<0.000000e+00> : vector<8x62xf32>
    %14 = tpu.matmul %12, %13, %cst_10 {dimension_numbers = #tpu.dot_dimension_numbers<[1], [0], [0], [1], [0, 0, 1, 1], [], []>} : vector<8x8xbf16>, vector<8x62xbf16>, vector<8x62xf32> -> vector<8x62xf32>
    %15 = arith.addf %10, %14 : vector<8x62xf32>
    %cst_11 = arith.constant 0.000000e+00 : f32
    %16 = vector.broadcast %cst_11 : f32 to vector<8x62xf32>
    %17 = arith.maximumf %15, %16 : vector<8x62xf32>
    %18 = arith.truncf %17 : vector<8x62xf32> to vector<8x62xbf16>
    %c0_12 = arith.constant 0 : index
    %c0_13 = arith.constant 0 : index
    %c0_14 = arith.constant 0 : index
    %19 = vector.load %arg3[%c0_12, %c0_13, %c0_14] : memref<3x16x8xbf16, #tpu.memory_space<vmem>>, vector<1x16x8xbf16>
    %20 = vector.shape_cast %19 : vector<1x16x8xbf16> to vector<16x8xbf16>
    %21 = vector.extract_strided_slice %18 {offsets = [0, 0], sizes = [8, 60], strides = [1, 1]} : vector<8x62xbf16> to vector<8x60xbf16>
    %cst_15 = arith.constant dense<0.000000e+00> : vector<16x60xf32>
    %22 = tpu.matmul %20, %21, %cst_15 {dimension_numbers = #tpu.dot_dimension_numbers<[1], [0], [0], [1], [0, 0, 1, 1], [], []>} : vector<16x8xbf16>, vector<8x60xbf16>, vector<16x60xf32> -> vector<16x60xf32>
    %c1_16 = arith.constant 1 : index
    %c0_17 = arith.constant 0 : index
    %c0_18 = arith.constant 0 : index
    %23 = vector.load %arg3[%c1_16, %c0_17, %c0_18] : memref<3x16x8xbf16, #tpu.memory_space<vmem>>, vector<1x16x8xbf16>
    %24 = vector.shape_cast %23 : vector<1x16x8xbf16> to vector<16x8xbf16>
    %25 = vector.extract_strided_slice %18 {offsets = [0, 1], sizes = [8, 60], strides = [1, 1]} : vector<8x62xbf16> to vector<8x60xbf16>
    %cst_19 = arith.constant dense<0.000000e+00> : vector<16x60xf32>
    %26 = tpu.matmul %24, %25, %cst_19 {dimension_numbers = #tpu.dot_dimension_numbers<[1], [0], [0], [1], [0, 0, 1, 1], [], []>} : vector<16x8xbf16>, vector<8x60xbf16>, vector<16x60xf32> -> vector<16x60xf32>
    %27 = arith.addf %22, %26 : vector<16x60xf32>
    %c2_20 = arith.constant 2 : index
    %c0_21 = arith.constant 0 : index
    %c0_22 = arith.constant 0 : index
    %28 = vector.load %arg3[%c2_20, %c0_21, %c0_22] : memref<3x16x8xbf16, #tpu.memory_space<vmem>>, vector<1x16x8xbf16>
    %29 = vector.shape_cast %28 : vector<1x16x8xbf16> to vector<16x8xbf16>
    %30 = vector.extract_strided_slice %18 {offsets = [0, 2], sizes = [8, 60], strides = [1, 1]} : vector<8x62xbf16> to vector<8x60xbf16>
    %cst_23 = arith.constant dense<0.000000e+00> : vector<16x60xf32>
    %31 = tpu.matmul %29, %30, %cst_23 {dimension_numbers = #tpu.dot_dimension_numbers<[1], [0], [0], [1], [0, 0, 1, 1], [], []>} : vector<16x8xbf16>, vector<8x60xbf16>, vector<16x60xf32> -> vector<16x60xf32>
    %32 = arith.addf %27, %31 : vector<16x60xf32>
    %33 = tpu.iota {dimensions = array<i32: 0>} : vector<60x30xi32>
    %34 = tpu.iota {dimensions = array<i32: 1>} : vector<60x30xi32>
    %c2_i32 = arith.constant 2 : i32
    %35 = vector.broadcast %c2_i32 : i32 to vector<60x30xi32>
    %36 = arith.muli %35, %34 : vector<60x30xi32>
    %37 = arith.cmpi eq, %33, %36 : vector<60x30xi32>
    %38 = arith.extui %37 : vector<60x30xi1> to vector<60x30xi32>
    %39 = arith.sitofp %38 : vector<60x30xi32> to vector<60x30xf32>
    %cst_24 = arith.constant dense<0.000000e+00> : vector<16x30xf32>
    %40 = tpu.matmul %32, %39, %cst_24 {dimension_numbers = #tpu.dot_dimension_numbers<[1], [0], [0], [1], [0, 0, 1, 1], [], []>} : vector<16x60xf32>, vector<60x30xf32>, vector<16x30xf32> -> vector<16x30xf32>
    %41 = math.tanh %40 : vector<16x30xf32>
    %42 = arith.truncf %41 : vector<16x30xf32> to vector<16x30xbf16>
    %c0_25 = arith.constant 0 : index
    %c0_26 = arith.constant 0 : index
    %c0_27 = arith.constant 0 : index
    %43 = vector.load %arg4[%c0_25, %c0_26, %c0_27] : memref<3x32x16xbf16, #tpu.memory_space<vmem>>, vector<1x32x16xbf16>
    %44 = vector.shape_cast %43 : vector<1x32x16xbf16> to vector<32x16xbf16>
    %45 = vector.extract_strided_slice %42 {offsets = [0, 0], sizes = [16, 28], strides = [1, 1]} : vector<16x30xbf16> to vector<16x28xbf16>
    %cst_28 = arith.constant dense<0.000000e+00> : vector<32x28xf32>
    %46 = tpu.matmul %44, %45, %cst_28 {dimension_numbers = #tpu.dot_dimension_numbers<[1], [0], [0], [1], [0, 0, 1, 1], [], []>} : vector<32x16xbf16>, vector<16x28xbf16>, vector<32x28xf32> -> vector<32x28xf32>
    %c1_29 = arith.constant 1 : index
    %c0_30 = arith.constant 0 : index
    %c0_31 = arith.constant 0 : index
    %47 = vector.load %arg4[%c1_29, %c0_30, %c0_31] : memref<3x32x16xbf16, #tpu.memory_space<vmem>>, vector<1x32x16xbf16>
    %48 = vector.shape_cast %47 : vector<1x32x16xbf16> to vector<32x16xbf16>
    %49 = vector.extract_strided_slice %42 {offsets = [0, 1], sizes = [16, 28], strides = [1, 1]} : vector<16x30xbf16> to vector<16x28xbf16>
    %cst_32 = arith.constant dense<0.000000e+00> : vector<32x28xf32>
    %50 = tpu.matmul %48, %49, %cst_32 {dimension_numbers = #tpu.dot_dimension_numbers<[1], [0], [0], [1], [0, 0, 1, 1], [], []>} : vector<32x16xbf16>, vector<16x28xbf16>, vector<32x28xf32> -> vector<32x28xf32>
    %51 = arith.addf %46, %50 : vector<32x28xf32>
    %c2_33 = arith.constant 2 : index
    %c0_34 = arith.constant 0 : index
    %c0_35 = arith.constant 0 : index
    %52 = vector.load %arg4[%c2_33, %c0_34, %c0_35] : memref<3x32x16xbf16, #tpu.memory_space<vmem>>, vector<1x32x16xbf16>
    %53 = vector.shape_cast %52 : vector<1x32x16xbf16> to vector<32x16xbf16>
    %54 = vector.extract_strided_slice %42 {offsets = [0, 2], sizes = [16, 28], strides = [1, 1]} : vector<16x30xbf16> to vector<16x28xbf16>
    %cst_36 = arith.constant dense<0.000000e+00> : vector<32x28xf32>
    %55 = tpu.matmul %53, %54, %cst_36 {dimension_numbers = #tpu.dot_dimension_numbers<[1], [0], [0], [1], [0, 0, 1, 1], [], []>} : vector<32x16xbf16>, vector<16x28xbf16>, vector<32x28xf32> -> vector<32x28xf32>
    %56 = arith.addf %51, %55 : vector<32x28xf32>
    %57 = tpu.iota {dimensions = array<i32: 0>} : vector<28x14xi32>
    %58 = tpu.iota {dimensions = array<i32: 1>} : vector<28x14xi32>
    %c2_i32_37 = arith.constant 2 : i32
    %59 = vector.broadcast %c2_i32_37 : i32 to vector<28x14xi32>
    %60 = arith.muli %59, %58 : vector<28x14xi32>
    %61 = arith.cmpi eq, %57, %60 : vector<28x14xi32>
    %62 = arith.extui %61 : vector<28x14xi1> to vector<28x14xi32>
    %63 = arith.sitofp %62 : vector<28x14xi32> to vector<28x14xf32>
    %cst_38 = arith.constant dense<0.000000e+00> : vector<32x14xf32>
    %64 = tpu.matmul %56, %63, %cst_38 {dimension_numbers = #tpu.dot_dimension_numbers<[1], [0], [0], [1], [0, 0, 1, 1], [], []>} : vector<32x28xf32>, vector<28x14xf32>, vector<32x14xf32> -> vector<32x14xf32>
    %65 = arith.negf %64 : vector<32x14xf32>
    %66 = math.exp %65 : vector<32x14xf32>
    %cst_39 = arith.constant 1.000000e+00 : f32
    %67 = vector.broadcast %cst_39 : f32 to vector<32x14xf32>
    %68 = arith.addf %67, %66 : vector<32x14xf32>
    %69 = arith.divf %67, %68 : vector<32x14xf32>
    %c0_40 = arith.constant 0 : index
    %c0_41 = arith.constant 0 : index
    %c0_42 = arith.constant 0 : index
    %70 = vector.load %arg5[%c0_40, %c0_41, %c0_42] : memref<1x32x14xf32, #tpu.memory_space<vmem>>, vector<1x32x14xf32>
    %71 = vector.shape_cast %70 : vector<1x32x14xf32> to vector<32x14xf32>
    %72 = vector.shape_cast %69 : vector<32x14xf32> to vector<1x32x14xf32>
    tpu.vector_store %arg5[%c0_40, %c0_41, %c0_42], %72 {strides = array<i32>} : memref<1x32x14xf32, #tpu.memory_space<vmem>>, vector<1x32x14xf32>,
    return
  }
  func.func @transform_0(%arg0: i32) -> (i32, i32, i32) {
    %c0_i32 = arith.constant 0 : i32
    %c0_i32_0 = arith.constant 0 : i32
    %c0_i32_1 = arith.constant 0 : i32
    return %arg0, %c0_i32, %c0_i32_0 : i32, i32, i32
  }
  func.func @transform_1(%arg0: i32) -> (i32, i32, i32) {
    %c0_i32 = arith.constant 0 : i32
    %c0_i32_0 = arith.constant 0 : i32
    %c0_i32_1 = arith.constant 0 : i32
    %c0_i32_2 = arith.constant 0 : i32
    return %c0_i32, %c0_i32_0, %c0_i32_1 : i32, i32, i32
  }
  func.func @transform_2(%arg0: i32) -> (i32, i32, i32) {
    %c0_i32 = arith.constant 0 : i32
    %c0_i32_0 = arith.constant 0 : i32
    %c0_i32_1 = arith.constant 0 : i32
    %c0_i32_2 = arith.constant 0 : i32
    return %c0_i32, %c0_i32_0, %c0_i32_1 : i32, i32, i32
  }
  func.func @transform_3(%arg0: i32) -> (i32, i32, i32) {
    %c0_i32 = arith.constant 0 : i32
    %c0_i32_0 = arith.constant 0 : i32
    %c0_i32_1 = arith.constant 0 : i32
    %c0_i32_2 = arith.constant 0 : i32
    return %c0_i32, %c0_i32_0, %c0_i32_1 : i32, i32, i32
  }
  func.func @transform_4(%arg0: i32) -> (i32, i32, i32) {
    %c0_i32 = arith.constant 0 : i32
    %c0_i32_0 = arith.constant 0 : i32
    %c0_i32_1 = arith.constant 0 : i32
    return %arg0, %c0_i32, %c0_i32_0 : i32, i32, i32
  }
}

</mosaic_0001>

<llo_original>
// kernel: tpu_custom_call.1
$region0: #{tpu_custom_call.1}
  #allocation0 [shape = 'u32[]', space=smem, size = 0x4, offset = 0x4, fixed_abs, tag = 'smem constant byte address 0x4 - core index']
  #allocation1 [shape = 'u32[144,128]{1,0:T(1,128)}', space=vmem, size = 0x12000, scoped, tag = 'internal scratch']
  %s0 = inlined_call_operand.vmem [shape: bf16[2,8,64], index: 0, kind: input, shape index: {}]
  %s1 = inlined_call_operand.vmem [shape: bf16[3,8,8], index: 1, kind: input, shape index: {}]
  %s2 = inlined_call_operand.vmem [shape: bf16[3,16,8], index: 2, kind: input, shape index: {}]
  %s3 = inlined_call_operand.vmem [shape: bf16[3,32,16], index: 3, kind: input, shape index: {}]
  %s4 = inlined_call_operand.vmem [shape: f32[2,32,14], index: 4, kind: output, shape index: {}]
  %s5 = sld [smem:[#allocation0]]
  $region49: #{tpu_custom_call.1} parent=0
    _
  %s7 = ssub.s32 1, %s5
  %s8 = scalar_select 0, %s7, %s5
  loop: start=0, step=1, limit=4
  $region2: #{tpu_custom_call.1} parent=0 // loop_pre_header
    _
  $region3: #{tpu_custom_call.1} parent=0 // loop_header
    %s10 = sphi 0, %s14
    %p11 = scmp.ge.s32.totalorder %s10, 4
    %s20 = sphi 0, %s22
    %s23 = sphi 0, %s20
    %s24 = sphi 0, %s23
    %s40 = sphi 0, %s24
    %s44 = sphi 0, %s44
    %s46 = sphi 0, %s44
    %s47 = sphi 0, %s46
    %s61 = sphi 0, %s47
    %s65 = sphi 0, %s65
    %s67 = sphi 0, %s65
    %s68 = sphi 0, %s67
    %s82 = sphi 0, %s68
    %s86 = sphi 0, %s86
    %s88 = sphi 0, %s86
    %s89 = sphi 0, %s88
    %s103 = sphi 0, %s89
    %s109 = sphi 0, %s111
    %s112 = sphi 0, %s109
    %s113 = sphi 0, %s112
    %s129 = sphi 0, %s113
  $region4: #{tpu_custom_call.1} parent=0 // loop_header_branch
    %13 = sbr.rel (%p11) target = $region8
  $region5: #{tpu_custom_call.1} parent=0 // loop_body
    %s15 = ssub.s32 %s10, 1
    %s16 = ssub.s32 %s10, 2
    %s17 = sadd.s32 %s10, 1
    %s18 = ssub.s32 %s10, %s17
    %p19 = scmp.eq.s32.totalorder %s18, 0
    %s21 = sadd.s32 %s20, 1
    %s22 = scalar_select %p19, %s20, %s21
    %p25 = pneg %p19
    %p26 = scmp.eq.s32.totalorder %s10, 1
    %p27 = por %p25, %p26
    %p28 = scmp.ne.s32.totalorder %s20, %s23
    %p29 = scmp.eq.s32.totalorder %s10, 0
    %p30 = por %p28, %p29
    %p31 = scmp.ne.s32.totalorder %s20, %s23
    %p32 = scmp.eq.s32.totalorder %s15, 1
    %p33 = por %p31, %p32
    %p34 = scmp.ne.s32.totalorder %s23, %s24
    %p35 = scmp.eq.s32.totalorder %s15, 0
    %p36 = por %p34, %p35
    %p37 = scmp.ne.s32.totalorder %s23, %s24
    %p38 = scmp.eq.s32.totalorder %s16, 1
    %p39 = por %p37, %p38
    %p41 = scmp.ne.s32.totalorder %s24, %s40
    %p42 = scmp.eq.s32.totalorder %s16, 0
    %p43 = por %p41, %p42
    %s45 = sadd.s32 %s44, 1
    %p48 = scmp.eq.s32.totalorder %s10, 1
    %p49 = scmp.ne.s32.totalorder %s44, %s46
    %p50 = scmp.eq.s32.totalorder %s10, 0
    %p51 = por %p49, %p50
    %p52 = scmp.ne.s32.totalorder %s44, %s46
    %p53 = scmp.eq.s32.totalorder %s15, 1
    %p54 = por %p52, %p53
    %p55 = scmp.ne.s32.totalorder %s46, %s47
    %p56 = scmp.eq.s32.totalorder %s15, 0
    %p57 = por %p55, %p56
    %p58 = scmp.ne.s32.totalorder %s46, %s47
    %p59 = scmp.eq.s32.totalorder %s16, 1
    %p60 = por %p58, %p59
    %p62 = scmp.ne.s32.totalorder %s47, %s61
    %p63 = scmp.eq.s32.totalorder %s16, 0
    %p64 = por %p62, %p63
    %s66 = sadd.s32 %s65, 1
    %p69 = scmp.eq.s32.totalorder %s10, 1
    %p70 = scmp.ne.s32.totalorder %s65, %s67
    %p71 = scmp.eq.s32.totalorder %s10, 0
    %p72 = por %p70, %p71
    %p73 = scmp.ne.s32.totalorder %s65, %s67
    %p74 = scmp.eq.s32.totalorder %s15, 1
    %p75 = por %p73, %p74
    %p76 = scmp.ne.s32.totalorder %s67, %s68
    %p77 = scmp.eq.s32.totalorder %s15, 0
    %p78 = por %p76, %p77
    %p79 = scmp.ne.s32.totalorder %s67, %s68
    %p80 = scmp.eq.s32.totalorder %s16, 1
    %p81 = por %p79, %p80
    %p83 = scmp.ne.s32.totalorder %s68, %s82
    %p84 = scmp.eq.s32.totalorder %s16, 0
    %p85 = por %p83, %p84
    %s87 = sadd.s32 %s86, 1
    %p90 = scmp.eq.s32.totalorder %s10, 1
    %p91 = scmp.ne.s32.totalorder %s86, %s88
    %p92 = scmp.eq.s32.totalorder %s10, 0
    %p93 = por %p91, %p92
    %p94 = scmp.ne.s32.totalorder %s86, %s88
    %p95 = scmp.eq.s32.totalorder %s15, 1
    %p96 = por %p94, %p95
    %p97 = scmp.ne.s32.totalorder %s88, %s89
    %p98 = scmp.eq.s32.totalorder %s15, 0
    %p99 = por %p97, %p98
    %p100 = scmp.ne.s32.totalorder %s88, %s89
    %p101 = scmp.eq.s32.totalorder %s16, 1
    %p102 = por %p100, %p101
    %p104 = scmp.ne.s32.totalorder %s89, %s103
    %p105 = scmp.eq.s32.totalorder %s16, 0
    %p106 = por %p104, %p105
    %s107 = ssub.s32 %s10, %s17
    %p108 = scmp.eq.s32.totalorder %s107, 0
    %s110 = sadd.s32 %s109, 1
    %s111 = scalar_select %p108, %s109, %s110
    %p114 = pneg %p108
    %p115 = scmp.eq.s32.totalorder %s10, 1
    %p116 = por %p114, %p115
    %p117 = scmp.ne.s32.totalorder %s109, %s112
    %p118 = scmp.eq.s32.totalorder %s10, 0
    %p119 = por %p117, %p118
    %p120 = scmp.ne.s32.totalorder %s109, %s112
    %p121 = scmp.eq.s32.totalorder %s15, 1
    %p122 = por %p120, %p121
    %p123 = scmp.ne.s32.totalorder %s112, %s113
    %p124 = scmp.eq.s32.totalorder %s15, 0
    %p125 = por %p123, %p124
    %p126 = scmp.ne.s32.totalorder %s112, %s113
    %p127 = scmp.eq.s32.totalorder %s16, 1
    %p128 = por %p126, %p127
    %p130 = scmp.ne.s32.totalorder %s113, %s129
    %p131 = scmp.eq.s32.totalorder %s16, 0
    %p132 = por %p130, %p131
    %p133 = scmp.le.s32.totalorder 1, %s10
    %p134 = scmp.lt.s32.totalorder %s10, 3
    %p135 = pnand %p133, %p134
    %p136 = pneg %p135
    // Predicated region
    $region9: #{tpu_custom_call.1} parent=5 // pred_check
      _
    $region10: #{tpu_custom_call.1} parent=5 // pred_check_branch
      %138 = sbr.rel (%p135) target = $region12
    $region11: #{tpu_custom_call.1} parent=5 // pred_region
      %s139 = ssub.s32 %s10, 1
      // Predicated region
      $region13: #{tpu_custom_call.1} parent=11 // pred_check
        %p140 = pneg %p57
      $region14: #{tpu_custom_call.1} parent=11 // pred_check_branch
        %142 = sbr.rel (%p140) target = $region16
      $region15: #{tpu_custom_call.1} parent=11 // pred_region
        _
      $region16: #{tpu_custom_call.1} parent=11 // pred_fallthru
        _
      // Predicated region
      $region17: #{tpu_custom_call.1} parent=11 // pred_check
        %p143 = pneg %p78
      $region18: #{tpu_custom_call.1} parent=11 // pred_check_branch
        %145 = sbr.rel (%p143) target = $region20
      $region19: #{tpu_custom_call.1} parent=11 // pred_region
        _
      $region20: #{tpu_custom_call.1} parent=11 // pred_fallthru
        _
      // Predicated region
      $region21: #{tpu_custom_call.1} parent=11 // pred_check
        %p146 = pneg %p99
      $region22: #{tpu_custom_call.1} parent=11 // pred_check_branch
        %148 = sbr.rel (%p146) target = $region24
      $region23: #{tpu_custom_call.1} parent=11 // pred_region
        _
      $region24: #{tpu_custom_call.1} parent=11 // pred_fallthru
        _
    $region12: #{tpu_custom_call.1} parent=5 // pred_fallthru
      _
    %p149 = scmp.lt.s32.totalorder %s10, 2
    // Predicated region
    $region25: #{tpu_custom_call.1} parent=5 // pred_check
      %p150 = pneg %p149
    $region26: #{tpu_custom_call.1} parent=5 // pred_check_branch
      %152 = sbr.rel (%p150) target = $region28
    $region27: #{tpu_custom_call.1} parent=5 // pred_region
      // Predicated region
      $region29: #{tpu_custom_call.1} parent=27 // pred_check
        %p153 = pneg %p30
      $region30: #{tpu_custom_call.1} parent=27 // pred_check_branch
        %155 = sbr.rel (%p153) target = $region32
      $region31: #{tpu_custom_call.1} parent=27 // pred_region
        %p156 = scmp.lt.s32.totalorder %s10, 1
        %s157 = scalar_select %p156, %s10, 1
        %s158 = smul.addr %s157, 4
        %s159 = scalar_lea.vmem %s0, %s158
      $region32: #{tpu_custom_call.1} parent=27 // pred_fallthru
        _
    $region28: #{tpu_custom_call.1} parent=5 // pred_fallthru
      _
    %p160 = scmp.le.s32.totalorder 1, %s10
    %p161 = scmp.lt.s32.totalorder %s10, 3
    %p162 = pnand %p160, %p161
    %p163 = pneg %p162
    // Predicated region
    $region33: #{tpu_custom_call.1} parent=5 // pred_check
      _
    $region34: #{tpu_custom_call.1} parent=5 // pred_check_branch
      %165 = sbr.rel (%p162) target = $region36
    $region35: #{tpu_custom_call.1} parent=5 // pred_region
      %s166 = ssub.s32 %s10, 1
      %p167 = scmp.lt.s32.totalorder %s15, 1
      %s168 = scalar_select %p167, %s15, 1
      %s169 = smul.addr %s168, 4
      %s170 = scalar_lea.vmem %s0, %s169
      %p171 = pneg %p36
      %p172 = pneg %p33
      %p173 = pneg %p57
      %p174 = pneg %p54
      %p175 = pneg %p78
      %p176 = pneg %p75
      %p177 = pneg %p99
      %p178 = pneg %p96
      %p179 = pneg %p125
      %p180 = pneg %p122
      %p181 = scmp.lt.s32.totalorder %s15, 1
      %s182 = scalar_select %p181, %s15, 1
      %s183 = smul.addr %s182, 4
      %s184 = smul.addr %s183, 8
      %s185 = scalar_lea.vmem %s4, %s184
      %p186 = scmp.lt.s32.totalorder %s15, 1
      %s187 = scalar_select %p186, %s15, 1
      %s188 = smul.addr %s187, 4
      %s189 = scalar_lea.vmem %s0, %s188
      %p190 = scmp.lt.s32.totalorder %s15, 1
      %s191 = scalar_select %p190, %s15, 1
      %s192 = smul.addr %s191, 4
      %s193 = smul.addr %s192, 8
      %s194 = scalar_lea.vmem %s4, %s193
      %v196 = vld [vmem:[%s189] sm:$0xf]
      %v197 = vld [vmem:[%s1] sm:$0xf]
      %s198 = scalar_lea.vmem %s1, 4
      %v199 = vld [vmem:[%s198] sm:$0xf]
      %v201 = vunpack.c.l.b16 %v196
      %v202 = vpack.c.b16 %v201, %v201
      %203 = vrot.lane.b32.xlu0 %v202, 127
      %v204 = vpop.permute.xlu0 %203
      %vm205 = vcmask 64512
      %v207 = vsel %vm205, %v199, 0
      %vm209 = vcmask 1043456
      %v211 = vsel %vm209, %v204, 0
      %213 = vmatprep.subr.bf16.mxu0 0
      %214 = vmatpush1.bf16.msra.mxu0 %v211
      %215 = vmatprep.subr.bf16.mxu0 0
      %216 = vmatpush1.bf16.msra.mxu0 0
      %217 = vmatprep.subr.bf16.mxu0 0
      %218 = vmatpush1.bf16.msra.mxu0 0
      %219 = vmatprep.subr.bf16.mxu0 0
      %220 = vmatpush1.bf16.msra.mxu0 0
      %221 = vmatprep.subr.bf16.mxu0 0
      %222 = vmatpush1.bf16.msra.mxu0 0
      %223 = vmatprep.subr.bf16.mxu0 0
      %224 = vmatpush1.bf16.msra.mxu0 0
      %225 = vmatprep.subr.bf16.mxu0 0
      %226 = vmatpush1.bf16.msra.mxu0 0
      %227 = vmatprep.subr.bf16.mxu0 0
      %228 = vmatpush1.bf16.msra.mxu0 0
      %229 = vmatprep.subr.bf16.mxu0 0
      %230 = vmatpush1.bf16.msra.mxu0 0
      %231 = vmatprep.subr.bf16.mxu0 0
      %232 = vmatpush1.bf16.msra.mxu0 0
      %233 = vmatprep.subr.bf16.mxu0 0
      %234 = vmatpush1.bf16.msra.mxu0 0
      %235 = vmatprep.subr.bf16.mxu0 0
      %236 = vmatpush1.bf16.msra.mxu0 0
      %237 = vmatprep.subr.bf16.mxu0 0
      %238 = vmatpush1.bf16.msra.mxu0 0
      %239 = vmatprep.subr.bf16.mxu0 0
      %240 = vmatpush1.bf16.msra.mxu0 0
      %241 = vmatprep.subr.bf16.mxu0 0
      %242 = vmatpush1.bf16.msra.mxu0 0
      %243 = vmatprep.subr.bf16.mxu0 0
      %244 = vmatpush1.bf16.msra.mxu0 0
      %245 = vmatprep.mubr.bf16.mxu0 0
      %246 = vmatmul.mubr.bf16.gmra.mrb[0].mxu0 %v207
      %v247 = vpop.f32.mrb[0].mxu0
      %v248 = vadd.f32 0.0, %v247
      %v249 = vpop.f32.mrb[0].mxu0
      %v250 = vpop.f32.mrb[0].mxu0
      %v251 = vpop.f32.mrb[0].mxu0
      %252 = vdwg.mxu0
      %v254 = vsel %vm205, %v197, 0
      %v257 = vsel %vm209, %v196, 0
      %259 = vmatprep.subr.bf16.mxu0 0
      %260 = vmatpush1.bf16.msra.mxu0 %v257
      %261 = vmatprep.subr.bf16.mxu0 0
      %262 = vmatpush1.bf16.msra.mxu0 0
      %263 = vmatprep.subr.bf16.mxu0 0
      %264 = vmatpush1.bf16.msra.mxu0 0
      %265 = vmatprep.subr.bf16.mxu0 0
      %266 = vmatpush1.bf16.msra.mxu0 0
      %267 = vmatprep.subr.bf16.mxu0 0
      %268 = vmatpush1.bf16.msra.mxu0 0
      %269 = vmatprep.subr.bf16.mxu0 0
      %270 = vmatpush1.bf16.msra.mxu0 0
      %271 = vmatprep.subr.bf16.mxu0 0
      %272 = vmatpush1.bf16.msra.mxu0 0
      %273 = vmatprep.subr.bf16.mxu0 0
      %274 = vmatpush1.bf16.msra.mxu0 0
      %275 = vmatprep.subr.bf16.mxu0 0
      %276 = vmatpush1.bf16.msra.mxu0 0
      %277 = vmatprep.subr.bf16.mxu0 0
      %278 = vmatpush1.bf16.msra.mxu0 0
      %279 = vmatprep.subr.bf16.mxu0 0
      %280 = vmatpush1.bf16.msra.mxu0 0
      %281 = vmatprep.subr.bf16.mxu0 0
      %282 = vmatpush1.bf16.msra.mxu0 0
      %283 = vmatprep.subr.bf16.mxu0 0
      %284 = vmatpush1.bf16.msra.mxu0 0
      %285 = vmatprep.subr.bf16.mxu0 0
      %286 = vmatpush1.bf16.msra.mxu0 0
      %287 = vmatprep.subr.bf16.mxu0 0
      %288 = vmatpush1.bf16.msra.mxu0 0
      %289 = vmatprep.subr.bf16.mxu0 0
      %290 = vmatpush1.bf16.msra.mxu0 0
      %291 = vmatprep.mubr.bf16.mxu0 0
      %292 = vmatmul.mubr.bf16.gmra.mrb[0].mxu0 %v254
      %v293 = vpop.f32.mrb[0].mxu0
      %v294 = vadd.f32 %v248, %v293
      %v295 = vpop.f32.mrb[0].mxu0
      %v296 = vpop.f32.mrb[0].mxu0
      %v297 = vpop.f32.mrb[0].mxu0
      %298 = vdwg.mxu0
      %s299 = scalar_lea.vmem %s1, 8
      %v300 = vld [vmem:[%s299] sm:$0xf]
      %301 = vrot.lane.b32.xlu0 %v202, 126
      %v302 = vpop.permute.xlu0 %301
      %v304 = vsel %vm205, %v300, 0
      %v307 = vsel %vm209, %v302, 0
      %309 = vmatprep.subr.bf16.mxu0 0
      %310 = vmatpush1.bf16.msra.mxu0 %v307
      %311 = vmatprep.subr.bf16.mxu0 0
      %312 = vmatpush1.bf16.msra.mxu0 0
      %313 = vmatprep.subr.bf16.mxu0 0
      %314 = vmatpush1.bf16.msra.mxu0 0
      %315 = vmatprep.subr.bf16.mxu0 0
      %316 = vmatpush1.bf16.msra.mxu0 0
      %317 = vmatprep.subr.bf16.mxu0 0
      %318 = vmatpush1.bf16.msra.mxu0 0
      %319 = vmatprep.subr.bf16.mxu0 0
      %320 = vmatpush1.bf16.msra.mxu0 0
      %321 = vmatprep.subr.bf16.mxu0 0
      %322 = vmatpush1.bf16.msra.mxu0 0
      %323 = vmatprep.subr.bf16.mxu0 0
      %324 = vmatpush1.bf16.msra.mxu0 0
      %325 = vmatprep.subr.bf16.mxu0 0
      %326 = vmatpush1.bf16.msra.mxu0 0
      %327 = vmatprep.subr.bf16.mxu0 0
      %328 = vmatpush1.bf16.msra.mxu0 0
      %329 = vmatprep.subr.bf16.mxu0 0
      %330 = vmatpush1.bf16.msra.mxu0 0
      %331 = vmatprep.subr.bf16.mxu0 0
      %332 = vmatpush1.bf16.msra.mxu0 0
      %333 = vmatprep.subr.bf16.mxu0 0
      %334 = vmatpush1.bf16.msra.mxu0 0
      %335 = vmatprep.subr.bf16.mxu0 0
      %336 = vmatpush1.bf16.msra.mxu0 0
      %337 = vmatprep.subr.bf16.mxu0 0
      %338 = vmatpush1.bf16.msra.mxu0 0
      %339 = vmatprep.subr.bf16.mxu0 0
      %340 = vmatpush1.bf16.msra.mxu0 0
      %341 = vmatprep.mubr.bf16.mxu0 0
      %342 = vmatmul.mubr.bf16.gmra.mrb[0].mxu0 %v304
      %v343 = vpop.f32.mrb[0].mxu0
      %v344 = vadd.f32 0.0, %v343
      %v345 = vpop.f32.mrb[0].mxu0
      %v346 = vpop.f32.mrb[0].mxu0
      %v347 = vpop.f32.mrb[0].mxu0
      %348 = vdwg.mxu0
      %v349 = vadd.f32 %v294, %v344
      %v350 = vmax.f32 %v349, 0.0
      %v351 = vpack.c.bf16 %v350, %v350
      %v352 = vld [vmem:[%s2] sm:$0xf]
      %v353 = vld [vmem:[%s2 + $0x4] sm:$0xf]
      %s354 = scalar_lea.vmem %s2, 8
      %v355 = vld [vmem:[%s354] sm:$0xf]
      %v356 = vld [vmem:[%s354 + $0x4] sm:$0xf]
      %v359 = vunpack.c.l.b16 %v355
      %v360 = vunpack.c.l.b16 %v356
      %v361 = vpack.c.b16 %v360, %v359
      %363 = vrot.lane.b32.xlu0 %v351, 127
      %v364 = vpop.permute.xlu0 %363
      %v366 = vsel %vm205, %v361, 0
      %v369 = vsel %vm209, %v364, 0
      %371 = vmatprep.subr.bf16.mxu0 0
      %372 = vmatpush1.bf16.msra.mxu0 %v369
      %373 = vmatprep.subr.bf16.mxu0 0
      %374 = vmatpush1.bf16.msra.mxu0 0
      %375 = vmatprep.subr.bf16.mxu0 0
      %376 = vmatpush1.bf16.msra.mxu0 0
      %377 = vmatprep.subr.bf16.mxu0 0
      %378 = vmatpush1.bf16.msra.mxu0 0
      %379 = vmatprep.subr.bf16.mxu0 0
      %380 = vmatpush1.bf16.msra.mxu0 0
      %381 = vmatprep.subr.bf16.mxu0 0
      %382 = vmatpush1.bf16.msra.mxu0 0
      %383 = vmatprep.subr.bf16.mxu0 0
      %384 = vmatpush1.bf16.msra.mxu0 0
      %385 = vmatprep.subr.bf16.mxu0 0
      %386 = vmatpush1.bf16.msra.mxu0 0
      %387 = vmatprep.subr.bf16.mxu0 0
      %388 = vmatpush1.bf16.msra.mxu0 0
      %389 = vmatprep.subr.bf16.mxu0 0
      %390 = vmatpush1.bf16.msra.mxu0 0
      %391 = vmatprep.subr.bf16.mxu0 0
      %392 = vmatpush1.bf16.msra.mxu0 0
      %393 = vmatprep.subr.bf16.mxu0 0
      %394 = vmatpush1.bf16.msra.mxu0 0
      %395 = vmatprep.subr.bf16.mxu0 0
      %396 = vmatpush1.bf16.msra.mxu0 0
      %397 = vmatprep.subr.bf16.mxu0 0
      %398 = vmatpush1.bf16.msra.mxu0 0
      %399 = vmatprep.subr.bf16.mxu0 0
      %400 = vmatpush1.bf16.msra.mxu0 0
      %401 = vmatprep.subr.bf16.mxu0 0
      %402 = vmatpush1.bf16.msra.mxu0 0
      %403 = vmatprep.mubr.bf16.mxu0 0
      %404 = vmatmul.mubr.bf16.gmra.mrb[0].mxu0 %v366
      %v405 = vpop.f32.mrb[0].mxu0
      %v406 = vadd.f32 0.0, %v405
      %v407 = vpop.f32.mrb[0].mxu0
      %v408 = vpop.f32.mrb[0].mxu0
      %v409 = vadd.f32 0.0, %v408
      %v410 = vpop.f32.mrb[0].mxu0
      %411 = vdwg.mxu0
      %v414 = vunpack.c.l.b16 %v352
      %v415 = vunpack.c.l.b16 %v353
      %v416 = vpack.c.b16 %v415, %v414
      %v418 = vsel %vm205, %v416, 0
      %v421 = vsel %vm209, %v351, 0
      %423 = vmatprep.subr.bf16.mxu0 0
      %424 = vmatpush1.bf16.msra.mxu0 %v421
      %425 = vmatprep.subr.bf16.mxu0 0
      %426 = vmatpush1.bf16.msra.mxu0 0
      %427 = vmatprep.subr.bf16.mxu0 0
      %428 = vmatpush1.bf16.msra.mxu0 0
      %429 = vmatprep.subr.bf16.mxu0 0
      %430 = vmatpush1.bf16.msra.mxu0 0
      %431 = vmatprep.subr.bf16.mxu0 0
      %432 = vmatpush1.bf16.msra.mxu0 0
      %433 = vmatprep.subr.bf16.mxu0 0
      %434 = vmatpush1.bf16.msra.mxu0 0
      %435 = vmatprep.subr.bf16.mxu0 0
      %436 = vmatpush1.bf16.msra.mxu0 0
      %437 = vmatprep.subr.bf16.mxu0 0
      %438 = vmatpush1.bf16.msra.mxu0 0
      %439 = vmatprep.subr.bf16.mxu0 0
      %440 = vmatpush1.bf16.msra.mxu0 0
      %441 = vmatprep.subr.bf16.mxu0 0
      %442 = vmatpush1.bf16.msra.mxu0 0
      %443 = vmatprep.subr.bf16.mxu0 0
      %444 = vmatpush1.bf16.msra.mxu0 0
      %445 = vmatprep.subr.bf16.mxu0 0
      %446 = vmatpush1.bf16.msra.mxu0 0
      %447 = vmatprep.subr.bf16.mxu0 0
      %448 = vmatpush1.bf16.msra.mxu0 0
      %449 = vmatprep.subr.bf16.mxu0 0
      %450 = vmatpush1.bf16.msra.mxu0 0
      %451 = vmatprep.subr.bf16.mxu0 0
      %452 = vmatpush1.bf16.msra.mxu0 0
      %453 = vmatprep.subr.bf16.mxu0 0
      %454 = vmatpush1.bf16.msra.mxu0 0
      %455 = vmatprep.mubr.bf16.mxu0 0
      %456 = vmatmul.mubr.bf16.gmra.mrb[0].mxu0 %v418
      %v457 = vpop.f32.mrb[0].mxu0
      %v458 = vadd.f32 %v406, %v457
      %v459 = vpop.f32.mrb[0].mxu0
      %v460 = vpop.f32.mrb[0].mxu0
      %v461 = vadd.f32 %v409, %v460
      %v462 = vpop.f32.mrb[0].mxu0
      %463 = vdwg.mxu0
      %s464 = scalar_lea.vmem %s2, 16
      %v465 = vld [vmem:[%s464] sm:$0xf]
      %v466 = vld [vmem:[%s464 + $0x4] sm:$0xf]
      %v469 = vunpack.c.l.b16 %v465
      %v470 = vunpack.c.l.b16 %v466
      %v471 = vpack.c.b16 %v470, %v469
      %472 = vrot.lane.b32.xlu0 %v351, 126
      %v473 = vpop.permute.xlu0 %472
      %v475 = vsel %vm205, %v471, 0
      %v478 = vsel %vm209, %v473, 0
      %480 = vmatprep.subr.bf16.mxu0 0
      %481 = vmatpush1.bf16.msra.mxu0 %v478
      %482 = vmatprep.subr.bf16.mxu0 0
      %483 = vmatpush1.bf16.msra.mxu0 0
      %484 = vmatprep.subr.bf16.mxu0 0
      %485 = vmatpush1.bf16.msra.mxu0 0
      %486 = vmatprep.subr.bf16.mxu0 0
      %487 = vmatpush1.bf16.msra.mxu0 0
      %488 = vmatprep.subr.bf16.mxu0 0
      %489 = vmatpush1.bf16.msra.mxu0 0
      %490 = vmatprep.subr.bf16.mxu0 0
      %491 = vmatpush1.bf16.msra.mxu0 0
      %492 = vmatprep.subr.bf16.mxu0 0
      %493 = vmatpush1.bf16.msra.mxu0 0
      %494 = vmatprep.subr.bf16.mxu0 0
      %495 = vmatpush1.bf16.msra.mxu0 0
      %496 = vmatprep.subr.bf16.mxu0 0
      %497 = vmatpush1.bf16.msra.mxu0 0
      %498 = vmatprep.subr.bf16.mxu0 0
      %499 = vmatpush1.bf16.msra.mxu0 0
      %500 = vmatprep.subr.bf16.mxu0 0
      %501 = vmatpush1.bf16.msra.mxu0 0
      %502 = vmatprep.subr.bf16.mxu0 0
      %503 = vmatpush1.bf16.msra.mxu0 0
      %504 = vmatprep.subr.bf16.mxu0 0
      %505 = vmatpush1.bf16.msra.mxu0 0
      %506 = vmatprep.subr.bf16.mxu0 0
      %507 = vmatpush1.bf16.msra.mxu0 0
      %508 = vmatprep.subr.bf16.mxu0 0
      %509 = vmatpush1.bf16.msra.mxu0 0
      %510 = vmatprep.subr.bf16.mxu0 0
      %511 = vmatpush1.bf16.msra.mxu0 0
      %512 = vmatprep.mubr.bf16.mxu0 0
      %513 = vmatmul.mubr.bf16.gmra.mrb[0].mxu0 %v475
      %v514 = vpop.f32.mrb[0].mxu0
      %v515 = vadd.f32 0.0, %v514
      %v516 = vpop.f32.mrb[0].mxu0
      %v517 = vpop.f32.mrb[0].mxu0
      %v518 = vadd.f32 0.0, %v517
      %v519 = vpop.f32.mrb[0].mxu0
      %520 = vdwg.mxu0
      %v521 = vadd.f32 %v458, %v515
      %v522 = vadd.f32 %v461, %v518
      %v523 = vlaneseq
      %v524 = vshrl.u32 %v523, 7
      %v525 = vadd.s32 %v524, 8
      %v526 = vadd.s32 %v524, 16
      %v527 = vadd.s32 %v524, 24
      %v528 = vadd.s32 %v524, 32
      %v529 = vadd.s32 %v524, 40
      %v530 = vadd.s32 %v524, 48
      %v531 = vadd.s32 %v524, 56
      %v532 = vlaneseq
      %v533 = vand.u32 %v532, 127
      %v534 = vmul.u32 %v533, 2
      %vm535 = vcmp.eq.s32.totalorder %v524, %v534
      %vm536 = vcmp.eq.s32.totalorder %v525, %v534
      %vm537 = vcmp.eq.s32.totalorder %v526, %v534
      %vm538 = vcmp.eq.s32.totalorder %v527, %v534
      %vm539 = vcmp.eq.s32.totalorder %v528, %v534
      %vm540 = vcmp.eq.s32.totalorder %v529, %v534
      %vm541 = vcmp.eq.s32.totalorder %v530, %v534
      %vm542 = vcmp.eq.s32.totalorder %v531, %v534
      %v543 = vsel %vm535, 1, 0
      %v544 = vsel %vm536, 1, 0
      %v545 = vsel %vm537, 1, 0
      %v546 = vsel %vm538, 1, 0
      %v547 = vsel %vm539, 1, 0
      %v548 = vsel %vm540, 1, 0
      %v549 = vsel %vm541, 1, 0
      %v550 = vsel %vm542, 1, 0
      %v551 = vcvt.s32.f32 %v543
      %v552 = vcvt.s32.f32 %v544
      %v553 = vcvt.s32.f32 %v545
      %v554 = vcvt.s32.f32 %v546
      %v555 = vcvt.s32.f32 %v547
      %v556 = vcvt.s32.f32 %v548
      %v557 = vcvt.s32.f32 %v549
      %v558 = vcvt.s32.f32 %v550
      %vm559 = vcmask 490496
      %v561 = vsel %vm559, %v521, 0
      %v564 = vsel %vm559, %v522, 0
      %v567 = vsel %vm209, %v558, 0
      %569 = vmatprep.subr.mxu0 0.0
      %570 = vmatpush1.msra.mxu0 %v551
      %571 = vmatprep.subr.mxu0 0.0
      %572 = vmatpush1.msra.mxu0 %v552
      %573 = vmatprep.subr.mxu0 0.0
      %574 = vmatpush1.msra.mxu0 %v553
      %575 = vmatprep.subr.mxu0 0.0
      %576 = vmatpush1.msra.mxu0 %v554
      %577 = vmatprep.subr.mxu0 0.0
      %578 = vmatpush1.msra.mxu0 %v555
      %579 = vmatprep.subr.mxu0 0.0
      %580 = vmatpush1.msra.mxu0 %v556
      %581 = vmatprep.subr.mxu0 0.0
      %582 = vmatpush1.msra.mxu0 %v557
      %583 = vmatprep.subr.mxu0 0.0
      %584 = vmatpush1.msra.mxu0 %v567
      %585 = vmatprep.subr.mxu0 0.0
      %586 = vmatpush1.msra.mxu0 0.0
      %587 = vmatprep.subr.mxu0 0.0
      %588 = vmatpush1.msra.mxu0 0.0
      %589 = vmatprep.subr.mxu0 0.0
      %590 = vmatpush1.msra.mxu0 0.0
      %591 = vmatprep.subr.mxu0 0.0
      %592 = vmatpush1.msra.mxu0 0.0
      %593 = vmatprep.subr.mxu0 0.0
      %594 = vmatpush1.msra.mxu0 0.0
      %595 = vmatprep.subr.mxu0 0.0
      %596 = vmatpush1.msra.mxu0 0.0
      %597 = vmatprep.subr.mxu0 0.0
      %598 = vmatpush1.msra.mxu0 0.0
      %599 = vmatprep.subr.mxu0 0.0
      %600 = vmatpush1.msra.mxu0 0.0
      %601 = vmatprep.subr.mxu0 0.0
      %602 = vmatpush1.msra.mxu0 0.0
      %603 = vmatprep.subr.mxu0 0.0
      %604 = vmatpush1.msra.mxu0 0.0
      %605 = vmatprep.subr.mxu0 0.0
      %606 = vmatpush1.msra.mxu0 0.0
      %607 = vmatprep.subr.mxu0 0.0
      %608 = vmatpush1.msra.mxu0 0.0
      %609 = vmatprep.subr.mxu0 0.0
      %610 = vmatpush1.msra.mxu0 0.0
      %611 = vmatprep.subr.mxu0 0.0
      %612 = vmatpush1.msra.mxu0 0.0
      %613 = vmatprep.subr.mxu0 0.0
      %614 = vmatpush1.msra.mxu0 0.0
      %615 = vmatprep.subr.mxu0 0.0
      %616 = vmatpush1.msra.mxu0 0.0
      %617 = vmatprep.subr.mxu0 0.0
      %618 = vmatpush1.msra.mxu0 0.0
      %619 = vmatprep.subr.mxu0 0.0
      %620 = vmatpush1.msra.mxu0 0.0
      %621 = vmatprep.subr.mxu0 0.0
      %622 = vmatpush1.msra.mxu0 0.0
      %623 = vmatprep.subr.mxu0 0.0
      %624 = vmatpush1.msra.mxu0 0.0
      %625 = vmatprep.subr.mxu0 0.0
      %626 = vmatpush1.msra.mxu0 0.0
      %627 = vmatprep.subr.mxu0 0.0
      %628 = vmatpush1.msra.mxu0 0.0
      %629 = vmatprep.subr.mxu0 0.0
      %630 = vmatpush1.msra.mxu0 0.0
      %631 = vmatprep.subr.mxu0 0.0
      %632 = vmatpush1.msra.mxu0 0.0
      %633 = vmatprep.mubr.f32.mxu0 0.0
      %634 = vmatmul.mubr.f32.gmra.mrb[0].mxu0 %v561
      %v635 = vpop.f32.mrb[0].mxu0
      %v636 = vadd.f32 0.0, %v635
      %v637 = vpop.f32.mrb[0].mxu0
      %638 = vmatprep.mubr.f32.mxu0 0.0
      %639 = vmatmul.mubr.f32.gmra.mrb[0].mxu0 %v564
      %v640 = vpop.f32.mrb[0].mxu0
      %v641 = vadd.f32 0.0, %v640
      %v642 = vpop.f32.mrb[0].mxu0
      %643 = vdwg.mxu0
      %v644 = vtanh.pop %v636
      %v645 = vtanh.pop %v641
      %v646 = vpack.c.bf16 %v645, %v644
      %v647 = vld [vmem:[%s3] sm:$0xf]
      %v648 = vld [vmem:[%s3 + $0x4] sm:$0xf]
      %v649 = vld [vmem:[%s3 + $0x8] sm:$0xf]
      %v650 = vld [vmem:[%s3 + $0xc] sm:$0xf]
      %s651 = scalar_lea.vmem %s3, 16
      %v652 = vld [vmem:[%s651] sm:$0xf]
      %v653 = vld [vmem:[%s651 + $0x4] sm:$0xf]
      %v654 = vld [vmem:[%s651 + $0x8] sm:$0xf]
      %v655 = vld [vmem:[%s651 + $0xc] sm:$0xf]
      %v660 = vunpack.c.l.b16 %v652
      %v661 = vunpack.c.l.b16 %v653
      %v662 = vunpack.c.l.b16 %v654
      %v663 = vunpack.c.l.b16 %v655
      %v664 = vpack.c.b16 %v661, %v660
      %v665 = vpack.c.b16 %v663, %v662
      %667 = vrot.lane.b32.xlu0 %v646, 127
      %v668 = vpop.permute.xlu0 %667
      %vm670 = vcmask 130048
      %v672 = vsel %vm670, %v664, 0
      %v675 = vsel %vm670, %v665, 0
      %677 = vmatprep.subr.bf16.mxu0 0
      %678 = vmatpush1.bf16.msra.mxu0 %v668
      %679 = vmatprep.subr.bf16.mxu0 0
      %680 = vmatpush1.bf16.msra.mxu0 0
      %681 = vmatprep.subr.bf16.mxu0 0
      %682 = vmatpush1.bf16.msra.mxu0 0
      %683 = vmatprep.subr.bf16.mxu0 0
      %684 = vmatpush1.bf16.msra.mxu0 0
      %685 = vmatprep.subr.bf16.mxu0 0
      %686 = vmatpush1.bf16.msra.mxu0 0
      %687 = vmatprep.subr.bf16.mxu0 0
      %688 = vmatpush1.bf16.msra.mxu0 0
      %689 = vmatprep.subr.bf16.mxu0 0
      %690 = vmatpush1.bf16.msra.mxu0 0
      %691 = vmatprep.subr.bf16.mxu0 0
      %692 = vmatpush1.bf16.msra.mxu0 0
      %693 = vmatprep.subr.bf16.mxu0 0
      %694 = vmatpush1.bf16.msra.mxu0 0
      %695 = vmatprep.subr.bf16.mxu0 0
      %696 = vmatpush1.bf16.msra.mxu0 0
      %697 = vmatprep.subr.bf16.mxu0 0
      %698 = vmatpush1.bf16.msra.mxu0 0
      %699 = vmatprep.subr.bf16.mxu0 0
      %700 = vmatpush1.bf16.msra.mxu0 0
      %701 = vmatprep.subr.bf16.mxu0 0
      %702 = vmatpush1.bf16.msra.mxu0 0
      %703 = vmatprep.subr.bf16.mxu0 0
      %704 = vmatpush1.bf16.msra.mxu0 0
      %705 = vmatprep.subr.bf16.mxu0 0
      %706 = vmatpush1.bf16.msra.mxu0 0
      %707 = vmatprep.subr.bf16.mxu0 0
      %708 = vmatpush1.bf16.msra.mxu0 0
      %709 = vmatprep.mubr.bf16.mxu0 0
      %710 = vmatmul.mubr.bf16.gmra.mrb[0].mxu0 %v672
      %v711 = vpop.f32.mrb[0].mxu0
      %v712 = vadd.f32 0.0, %v711
      %v713 = vpop.f32.mrb[0].mxu0
      %v714 = vpop.f32.mrb[0].mxu0
      %v715 = vadd.f32 0.0, %v714
      %v716 = vpop.f32.mrb[0].mxu0
      %717 = vmatprep.mubr.bf16.mxu0 0
      %718 = vmatmul.mubr.bf16.gmra.mrb[0].mxu0 %v675
      %v719 = vpop.f32.mrb[0].mxu0
      %v720 = vadd.f32 0.0, %v719
      %v721 = vpop.f32.mrb[0].mxu0
      %v722 = vpop.f32.mrb[0].mxu0
      %v723 = vadd.f32 0.0, %v722
      %v724 = vpop.f32.mrb[0].mxu0
      %725 = vdwg.mxu0
      %v730 = vunpack.c.l.b16 %v647
      %v731 = vunpack.c.l.b16 %v648
      %v732 = vunpack.c.l.b16 %v649
      %v733 = vunpack.c.l.b16 %v650
      %v734 = vpack.c.b16 %v731, %v730
      %v735 = vpack.c.b16 %v733, %v732
      %v737 = vsel %vm670, %v734, 0
      %v740 = vsel %vm670, %v735, 0
      %742 = vmatprep.subr.bf16.mxu0 0
      %743 = vmatpush1.bf16.msra.mxu0 %v646
      %744 = vmatprep.subr.bf16.mxu0 0
      %745 = vmatpush1.bf16.msra.mxu0 0
      %746 = vmatprep.subr.bf16.mxu0 0
      %747 = vmatpush1.bf16.msra.mxu0 0
      %748 = vmatprep.subr.bf16.mxu0 0
      %749 = vmatpush1.bf16.msra.mxu0 0
      %750 = vmatprep.subr.bf16.mxu0 0
      %751 = vmatpush1.bf16.msra.mxu0 0
      %752 = vmatprep.subr.bf16.mxu0 0
      %753 = vmatpush1.bf16.msra.mxu0 0
      %754 = vmatprep.subr.bf16.mxu0 0
      %755 = vmatpush1.bf16.msra.mxu0 0
      %756 = vmatprep.subr.bf16.mxu0 0
      %757 = vmatpush1.bf16.msra.mxu0 0
      %758 = vmatprep.subr.bf16.mxu0 0
      %759 = vmatpush1.bf16.msra.mxu0 0
      %760 = vmatprep.subr.bf16.mxu0 0
      %761 = vmatpush1.bf16.msra.mxu0 0
      %762 = vmatprep.subr.bf16.mxu0 0
      %763 = vmatpush1.bf16.msra.mxu0 0
      %764 = vmatprep.subr.bf16.mxu0 0
      %765 = vmatpush1.bf16.msra.mxu0 0
      %766 = vmatprep.subr.bf16.mxu0 0
      %767 = vmatpush1.bf16.msra.mxu0 0
      %768 = vmatprep.subr.bf16.mxu0 0
      %769 = vmatpush1.bf16.msra.mxu0 0
      %770 = vmatprep.subr.bf16.mxu0 0
      %771 = vmatpush1.bf16.msra.mxu0 0
      %772 = vmatprep.subr.bf16.mxu0 0
      %773 = vmatpush1.bf16.msra.mxu0 0
      %774 = vmatprep.mubr.bf16.mxu0 0
      %775 = vmatmul.mubr.bf16.gmra.mrb[0].mxu0 %v737
      %v776 = vpop.f32.mrb[0].mxu0
      %v777 = vadd.f32 %v712, %v776
      %v778 = vpop.f32.mrb[0].mxu0
      %v779 = vpop.f32.mrb[0].mxu0
      %v780 = vadd.f32 %v715, %v779
      %v781 = vpop.f32.mrb[0].mxu0
      %782 = vmatprep.mubr.bf16.mxu0 0
      %783 = vmatmul.mubr.bf16.gmra.mrb[0].mxu0 %v740
      %v784 = vpop.f32.mrb[0].mxu0
      %v785 = vadd.f32 %v720, %v784
      %v786 = vpop.f32.mrb[0].mxu0
      %v787 = vpop.f32.mrb[0].mxu0
      %v788 = vadd.f32 %v723, %v787
      %v789 = vpop.f32.mrb[0].mxu0
      %790 = vdwg.mxu0
      %s791 = scalar_lea.vmem %s3, 32
      %v792 = vld [vmem:[%s791] sm:$0xf]
      %v793 = vld [vmem:[%s791 + $0x4] sm:$0xf]
      %v794 = vld [vmem:[%s791 + $0x8] sm:$0xf]
      %v795 = vld [vmem:[%s791 + $0xc] sm:$0xf]
      %v800 = vunpack.c.l.b16 %v792
      %v801 = vunpack.c.l.b16 %v793
      %v802 = vunpack.c.l.b16 %v794
      %v803 = vunpack.c.l.b16 %v795
      %v804 = vpack.c.b16 %v801, %v800
      %v805 = vpack.c.b16 %v803, %v802
      %806 = vrot.lane.b32.xlu0 %v646, 126
      %v807 = vpop.permute.xlu0 %806
      %v810 = vsel %vm670, %v804, 0
      %v813 = vsel %vm670, %v805, 0
      %815 = vmatprep.subr.bf16.mxu0 0
      %816 = vmatpush1.bf16.msra.mxu0 %v807
      %817 = vmatprep.subr.bf16.mxu0 0
      %818 = vmatpush1.bf16.msra.mxu0 0
      %819 = vmatprep.subr.bf16.mxu0 0
      %820 = vmatpush1.bf16.msra.mxu0 0
      %821 = vmatprep.subr.bf16.mxu0 0
      %822 = vmatpush1.bf16.msra.mxu0 0
      %823 = vmatprep.subr.bf16.mxu0 0
      %824 = vmatpush1.bf16.msra.mxu0 0
      %825 = vmatprep.subr.bf16.mxu0 0
      %826 = vmatpush1.bf16.msra.mxu0 0
      %827 = vmatprep.subr.bf16.mxu0 0
      %828 = vmatpush1.bf16.msra.mxu0 0
      %829 = vmatprep.subr.bf16.mxu0 0
      %830 = vmatpush1.bf16.msra.mxu0 0
      %831 = vmatprep.subr.bf16.mxu0 0
      %832 = vmatpush1.bf16.msra.mxu0 0
      %833 = vmatprep.subr.bf16.mxu0 0
      %834 = vmatpush1.bf16.msra.mxu0 0
      %835 = vmatprep.subr.bf16.mxu0 0
      %836 = vmatpush1.bf16.msra.mxu0 0
      %837 = vmatprep.subr.bf16.mxu0 0
      %838 = vmatpush1.bf16.msra.mxu0 0
      %839 = vmatprep.subr.bf16.mxu0 0
      %840 = vmatpush1.bf16.msra.mxu0 0
      %841 = vmatprep.subr.bf16.mxu0 0
      %842 = vmatpush1.bf16.msra.mxu0 0
      %843 = vmatprep.subr.bf16.mxu0 0
      %844 = vmatpush1.bf16.msra.mxu0 0
      %845 = vmatprep.subr.bf16.mxu0 0
      %846 = vmatpush1.bf16.msra.mxu0 0
      %847 = vmatprep.mubr.bf16.mxu0 0
      %848 = vmatmul.mubr.bf16.gmra.mrb[0].mxu0 %v810
      %v849 = vpop.f32.mrb[0].mxu0
      %v850 = vadd.f32 0.0, %v849
      %v851 = vpop.f32.mrb[0].mxu0
      %v852 = vpop.f32.mrb[0].mxu0
      %v853 = vadd.f32 0.0, %v852
      %v854 = vpop.f32.mrb[0].mxu0
      %855 = vmatprep.mubr.bf16.mxu0 0
      %856 = vmatmul.mubr.bf16.gmra.mrb[0].mxu0 %v813
      %v857 = vpop.f32.mrb[0].mxu0
      %v858 = vadd.f32 0.0, %v857
      %v859 = vpop.f32.mrb[0].mxu0
      %v860 = vpop.f32.mrb[0].mxu0
      %v861 = vadd.f32 0.0, %v860
      %v862 = vpop.f32.mrb[0].mxu0
      %863 = vdwg.mxu0
      %v864 = vadd.f32 %v777, %v850
      %v865 = vadd.f32 %v780, %v853
      %v866 = vadd.f32 %v785, %v858
      %v867 = vadd.f32 %v788, %v861
      %vm868 = vcmask 228352
      %v870 = vsel %vm868, %v864, 0
      %v873 = vsel %vm868, %v865, 0
      %v876 = vsel %vm868, %v866, 0
      %v879 = vsel %vm868, %v867, 0
      %v882 = vsel %vm209, %v554, 0
      %884 = vmatprep.subr.mxu0 0.0
      %885 = vmatpush1.msra.mxu0 %v551
      %886 = vmatprep.subr.mxu0 0.0
      %887 = vmatpush1.msra.mxu0 %v552
      %888 = vmatprep.subr.mxu0 0.0
      %889 = vmatpush1.msra.mxu0 %v553
      %890 = vmatprep.subr.mxu0 0.0
      %891 = vmatpush1.msra.mxu0 %v882
      %892 = vmatprep.subr.mxu0 0.0
      %893 = vmatpush1.msra.mxu0 0.0
      %894 = vmatprep.subr.mxu0 0.0
      %895 = vmatpush1.msra.mxu0 0.0
      %896 = vmatprep.subr.mxu0 0.0
      %897 = vmatpush1.msra.mxu0 0.0
      %898 = vmatprep.subr.mxu0 0.0
      %899 = vmatpush1.msra.mxu0 0.0
      %900 = vmatprep.subr.mxu0 0.0
      %901 = vmatpush1.msra.mxu0 0.0
      %902 = vmatprep.subr.mxu0 0.0
      %903 = vmatpush1.msra.mxu0 0.0
      %904 = vmatprep.subr.mxu0 0.0
      %905 = vmatpush1.msra.mxu0 0.0
      %906 = vmatprep.subr.mxu0 0.0
      %907 = vmatpush1.msra.mxu0 0.0
      %908 = vmatprep.subr.mxu0 0.0
      %909 = vmatpush1.msra.mxu0 0.0
      %910 = vmatprep.subr.mxu0 0.0
      %911 = vmatpush1.msra.mxu0 0.0
      %912 = vmatprep.subr.mxu0 0.0
      %913 = vmatpush1.msra.mxu0 0.0
      %914 = vmatprep.subr.mxu0 0.0
      %915 = vmatpush1.msra.mxu0 0.0
      %916 = vmatprep.subr.mxu0 0.0
      %917 = vmatpush1.msra.mxu0 0.0
      %918 = vmatprep.subr.mxu0 0.0
      %919 = vmatpush1.msra.mxu0 0.0
      %920 = vmatprep.subr.mxu0 0.0
      %921 = vmatpush1.msra.mxu0 0.0
      %922 = vmatprep.subr.mxu0 0.0
      %923 = vmatpush1.msra.mxu0 0.0
      %924 = vmatprep.subr.mxu0 0.0
      %925 = vmatpush1.msra.mxu0 0.0
      %926 = vmatprep.subr.mxu0 0.0
      %927 = vmatpush1.msra.mxu0 0.0
      %928 = vmatprep.subr.mxu0 0.0
      %929 = vmatpush1.msra.mxu0 0.0
      %930 = vmatprep.subr.mxu0 0.0
      %931 = vmatpush1.msra.mxu0 0.0
      %932 = vmatprep.subr.mxu0 0.0
      %933 = vmatpush1.msra.mxu0 0.0
      %934 = vmatprep.subr.mxu0 0.0
      %935 = vmatpush1.msra.mxu0 0.0
      %936 = vmatprep.subr.mxu0 0.0
      %937 = vmatpush1.msra.mxu0 0.0
      %938 = vmatprep.subr.mxu0 0.0
      %939 = vmatpush1.msra.mxu0 0.0
      %940 = vmatprep.subr.mxu0 0.0
      %941 = vmatpush1.msra.mxu0 0.0
      %942 = vmatprep.subr.mxu0 0.0
      %943 = vmatpush1.msra.mxu0 0.0
      %944 = vmatprep.subr.mxu0 0.0
      %945 = vmatpush1.msra.mxu0 0.0
      %946 = vmatprep.subr.mxu0 0.0
      %947 = vmatpush1.msra.mxu0 0.0
      %948 = vmatprep.mubr.f32.mxu0 0.0
      %949 = vmatmul.mubr.f32.gmra.mrb[0].mxu0 %v870
      %v950 = vpop.f32.mrb[0].mxu0
      %v951 = vadd.f32 0.0, %v950
      %v952 = vpop.f32.mrb[0].mxu0
      %953 = vmatprep.mubr.f32.mxu0 0.0
      %954 = vmatmul.mubr.f32.gmra.mrb[0].mxu0 %v873
      %v955 = vpop.f32.mrb[0].mxu0
      %v956 = vadd.f32 0.0, %v955
      %v957 = vpop.f32.mrb[0].mxu0
      %958 = vmatprep.mubr.f32.mxu0 0.0
      %959 = vmatmul.mubr.f32.gmra.mrb[0].mxu0 %v876
      %v960 = vpop.f32.mrb[0].mxu0
      %v961 = vadd.f32 0.0, %v960
      %v962 = vpop.f32.mrb[0].mxu0
      %963 = vmatprep.mubr.f32.mxu0 0.0
      %964 = vmatmul.mubr.f32.gmra.mrb[0].mxu0 %v879
      %v965 = vpop.f32.mrb[0].mxu0
      %v966 = vadd.f32 0.0, %v965
      %v967 = vpop.f32.mrb[0].mxu0
      %968 = vdwg.mxu0
      %v969 = vxor.u32 %v951, 2147483648
      %v970 = vxor.u32 %v956, 2147483648
      %v971 = vxor.u32 %v961, 2147483648
      %v972 = vxor.u32 %v966, 2147483648
      %v973 = vmul.f32 %v969, 1.442695
      %v974 = vpow.pop %v973
      %v975 = vmul.f32 %v970, 1.442695
      %v976 = vpow.pop %v975
      %v977 = vmul.f32 %v971, 1.442695
      %v978 = vpow.pop %v977
      %v979 = vmul.f32 %v972, 1.442695
      %v980 = vpow.pop %v979
      %v981 = vadd.f32 %v974, 1.0
      %v982 = vadd.f32 %v976, 1.0
      %v983 = vadd.f32 %v978, 1.0
      %v984 = vadd.f32 %v980, 1.0
      %v985 = vrcp.pop %v981
      %v986 = vmul.f32 1.0, %v985
      %v987 = vrcp.pop %v982
      %v988 = vmul.f32 1.0, %v987
      %v989 = vrcp.pop %v983
      %v990 = vmul.f32 1.0, %v989
      %v991 = vrcp.pop %v984
      %v992 = vmul.f32 1.0, %v991
      %vm993 = vcmask 113664
      %994 = vst.msk [vmem:[%s194] sm:$0xff] %vm993, %v986
      %995 = vst.msk [vmem:[%s194 + $0x8] sm:$0xff] %vm993, %v988
      %996 = vst.msk [vmem:[%s194 + $0x10] sm:$0xff] %vm993, %v990
      %997 = vst.msk [vmem:[%s194 + $0x18] sm:$0xff] %vm993, %v992
      %p998 = scmp.lt.s32.totalorder %s15, 1
      %s999 = scalar_select %p998, %s15, 1
      %s1000 = smul.addr %s999, 4
      %s1001 = smul.addr %s1000, 8
      %s1002 = scalar_lea.vmem %s4, %s1001
      // Predicated region
      $region37: #{tpu_custom_call.1} parent=35 // pred_check
        %p1003 = pneg %p122
      $region38: #{tpu_custom_call.1} parent=35 // pred_check_branch
        %1005 = sbr.rel (%p1003) target = $region40
      $region39: #{tpu_custom_call.1} parent=35 // pred_region
        _
      $region40: #{tpu_custom_call.1} parent=35 // pred_fallthru
        _
    $region36: #{tpu_custom_call.1} parent=5 // pred_fallthru
      _
    %p1006 = scmp.le.s32.totalorder 2, %s10
    // Predicated region
    $region41: #{tpu_custom_call.1} parent=5 // pred_check
      %p1007 = pneg %p1006
    $region42: #{tpu_custom_call.1} parent=5 // pred_check_branch
      %1009 = sbr.rel (%p1007) target = $region44
    $region43: #{tpu_custom_call.1} parent=5 // pred_region
      %s1010 = ssub.s32 %s10, 2
      // Predicated region
      $region45: #{tpu_custom_call.1} parent=43 // pred_check
        %p1011 = pneg %p128
      $region46: #{tpu_custom_call.1} parent=43 // pred_check_branch
        %1013 = sbr.rel (%p1011) target = $region48
      $region47: #{tpu_custom_call.1} parent=43 // pred_region
        %p1014 = scmp.lt.s32.totalorder %s16, 1
        %s1015 = scalar_select %p1014, %s16, 1
        %s1016 = smul.addr %s1015, 4
        %s1017 = smul.addr %s1016, 8
        %s1018 = scalar_lea.vmem %s4, %s1017
      $region48: #{tpu_custom_call.1} parent=43 // pred_fallthru
        _
    $region44: #{tpu_custom_call.1} parent=5 // pred_fallthru
      _
  $region6: #{tpu_custom_call.1} parent=0 // loop_footer
    %s14 = sadd.s32 1, %s10
  $region7: #{tpu_custom_call.1} parent=0 // loop_footer_branch
    %9 = sbr.rel target = $region3
  $region8: #{tpu_custom_call.1} parent=0 // loop_exit
    _

</llo_original>
